<compile_context>
chip_gen: v5e
topology: v5e:2x2
jax: 0.10.0
libtpu: 0.0.40
codegen_flags: <defaults>
</compile_context>

<pallas_src>
import jax
import jax.numpy as jnp
from jax.experimental import pallas as pl
from jax.experimental.pallas import tpu as pltpu

H_IN = 4          # input spatial size (x1 is 1x1x4x4)
H1 = H_IN + 1     # after 1st conv_transpose (k=3, s=1, p=1, out_pad=1) -> 5
H2 = H1           # 3x3 conv with padding=1 keeps size                  -> 5
H_OUT = H2 + 1    # after 2nd conv_transpose                            -> 6
BN_EPS = 1e-5
R, C = 8, 128     # canvas = exactly one f32 vreg


def _model_kernel(x_ref, wt_ref, wc_ref, s_ref, o_ref):
    """Whole forward pass, register-resident on a single (8,128) canvas.

    x_ref  : (8,128) VMEM  input canvas; x in [0:4, 0:4], zeros elsewhere
    wt_ref : (9,)    SMEM  flat ConvTranspose2d weight (unflipped; flip folded in indexing)
    wc_ref : (9,)    SMEM  flat Conv2d weight
    s_ref  : (5,)    SMEM  [gamma, beta, conv_bias, convT_bias, eps]
    o_ref  : (8,128) VMEM  lane-dense output block; valid result in [0:6, 0:6]
    """
    gamma = s_ref[0]
    beta = s_ref[1]
    conv_b = s_ref[2]
    ct_b = s_ref[3]
    eps = s_ref[4]

    v0 = x_ref[...]

    row = jax.lax.broadcasted_iota(jnp.int32, (R, C), 0)
    col = jax.lax.broadcasted_iota(jnp.int32, (R, C), 1)
    mask5 = (row < H1) & (col < H1)
    mask6 = (row < H_OUT) & (col < H_OUT)

    # pltpu.roll follows jnp.roll semantics: rolled[i] = v[i - shift]
    #  => t[i] = v[i + d] is roll(v, shift=-d). (Cyclic wraps land on masked zeros.)
    def row_shift(v, dy):   # t[i, j] = v[i + dy, j]
        return v if dy == 0 else pltpu.roll(v, shift=(-dy) % R, axis=0)

    def col_shift(v, dx):   # t[i, j] = v[i, j + dx]
        return v if dx == 0 else pltpu.roll(v, shift=(-dx) % C, axis=1)

    def corr3x3(v, w):
        # out[i,j] = sum_{kh,kw} w(kh,kw) * v[i+kh-1, j+kw-1]   (pad=1 correlation)
        # Shared lane shifts: 2 lane rolls + 2 sublane rolls = 4 XLU ops per stage.
        taps = (col_shift(v, -1), v, col_shift(v, 1))
        rows = [taps[0] * w(kh, 0) + taps[1] * w(kh, 1) + taps[2] * w(kh, 2)
                for kh in range(3)]
        return row_shift(rows[0], -1) + rows[1] + row_shift(rows[2], 1)

    # spatial flip of the transposed-conv weight folded into static SMEM index math
    wt = lambda kh, kw: wt_ref[8 - 3 * kh - kw]   # flipped ConvTranspose2d weight
    wc = lambda kh, kw: wc_ref[3 * kh + kw]       # Conv2d weight

    # ---- stage 1: ConvTranspose2d(k3, s1, p1, out_pad1) + bias : 4x4 -> 5x5
    v1 = jnp.where(mask5, corr3x3(v0, wt) + ct_b, 0.0)

    # ---- stage 2: BatchNorm2d(1), training mode -> one-pass batch stats, FMA form
    inv_n = 1.0 / float(H1 * H1)
    s = jnp.sum(jnp.sum(v1, axis=1, keepdims=True), axis=0, keepdims=True)        # (1,1)
    ss = jnp.sum(jnp.sum(v1 * v1, axis=1, keepdims=True), axis=0, keepdims=True)  # (1,1)
    mean = s * inv_n
    var = jnp.maximum(ss * inv_n - mean * mean, 0.0)   # clamp f32 cancellation
    scale = jax.lax.rsqrt(var + eps) * gamma           # (1,1)
    offset = beta - mean * scale                       # (1,1)
    v2 = jnp.where(mask5, v1 * scale + offset, 0.0)

    # ---- stage 3: Conv2d(k3, s1, p1) + bias : 5x5 -> 5x5
    v3 = jnp.where(mask5, corr3x3(v2, wc) + conv_b, 0.0)

    # ---- stage 4: ConvTranspose2d (same weight/bias) : 5x5 -> 6x6
    v4 = jnp.where(mask6, corr3x3(v3, wt) + ct_b, 0.0)

    # lane-dense, unmasked full-vreg store; valid data in [0:6, 0:6]
    o_ref[...] = v4


def pack_params(wt, wc, conv_bias, ct_bias, gamma, beta, eps=BN_EPS):
    """One-time host-side prep (kept out of the per-call path): flat weights + packed scalars."""
    wt9 = jnp.asarray(wt, jnp.float32).reshape(9)
    wc9 = jnp.asarray(wc, jnp.float32).reshape(9)
    scal = jnp.stack([jnp.asarray(gamma, jnp.float32),
                      jnp.asarray(beta, jnp.float32),
                      jnp.asarray(conv_bias, jnp.float32),
                      jnp.asarray(ct_bias, jnp.float32),
                      jnp.asarray(eps, jnp.float32)])
    return wt9, wc9, scal


@jax.jit
def model_forward(x_nchw, wt9, wc9, scal):
    """x_nchw: (1,1,4,4). Returns (1,1,6,6)."""
    x2d = x_nchw[0, 0].astype(jnp.float32)
    # pre-pad to the single-vreg canvas outside the kernel; BlockSpec DMA delivers it shaped
    canvas = jnp.zeros((R, C), jnp.float32).at[:H_IN, :H_IN].set(x2d)
    raw = pl.pallas_call(
        _model_kernel,
        out_shape=jax.ShapeDtypeStruct((R, C), jnp.float32),
        in_specs=[
            pl.BlockSpec(memory_space=pltpu.MemorySpace.VMEM),   # input canvas (8,128)
            pl.BlockSpec(memory_space=pltpu.MemorySpace.SMEM),   # flat convT weight (9,)
            pl.BlockSpec(memory_space=pltpu.MemorySpace.SMEM),   # flat conv weight (9,)
            pl.BlockSpec(memory_space=pltpu.MemorySpace.SMEM),   # scalars (5,)
        ],
        out_specs=pl.BlockSpec(memory_space=pltpu.MemorySpace.VMEM),
    )(canvas, wt9, wc9, scal)
    return raw[:H_OUT, :H_OUT][None, None]


def reference_forward(x_nchw, wt, wc, conv_bias, ct_bias, gamma, beta, eps=BN_EPS):
    """Plain-JAX reference with the same math, for correctness checking."""
    x = x_nchw[0, 0].astype(jnp.float32)
    wtf = wt[0, 0, ::-1, ::-1].astype(jnp.float32)
    wc2 = wc[0, 0].astype(jnp.float32)

    def corr(img, pad_lo, pad_hi, k):
        p = jnp.pad(img, ((pad_lo, pad_hi), (pad_lo, pad_hi)))
        oh, ow = p.shape[0] - 2, p.shape[1] - 2
        o = jnp.zeros((oh, ow), jnp.float32)
        for kh in range(3):
            for kw in range(3):
                o = o + p[kh:kh + oh, kw:kw + ow] * k[kh, kw]
        return o

    v1 = corr(x, 1, 2, wtf) + ct_bias
    mean = v1.mean()
    var = ((v1 - mean) ** 2).mean()
    v2 = (v1 - mean) / jnp.sqrt(var + eps) * gamma + beta
    v3 = corr(v2, 1, 1, wc2) + conv_bias
    v4 = corr(v3, 1, 2, wtf) + ct_bias
    return v4[None, None]


if __name__ == "__main__":
    key = jax.random.PRNGKey(0)
    kx, kwt, kwc, kb, kbt = jax.random.split(key, 5)

    # deterministic synthetic parameters (shapes per the module __init__)
    x1 = jax.random.normal(kx, (1, 1, 4, 4), jnp.float32)
    wt = jax.random.normal(kwt, (1, 1, 3, 3), jnp.float32) * 0.3   # ConvTranspose2d weight (in,out,kh,kw)
    wc = jax.random.normal(kwc, (1, 1, 3, 3), jnp.float32) * 0.3   # Conv2d weight (out,in,kh,kw)
    conv_bias = jax.random.normal(kb, (), jnp.float32) * 0.1       # Conv2d bias
    ct_bias = jax.random.normal(kbt, (), jnp.float32) * 0.1        # ConvTranspose2d bias (default bias=True)
    gamma = jnp.float32(1.0)                                       # BatchNorm2d defaults
    beta = jnp.float32(0.0)

    wt9, wc9, scal = pack_params(wt, wc, conv_bias, ct_bias, gamma, beta)
    out = jax.block_until_ready(model_forward(x1, wt9, wc9, scal))

    ref = reference_forward(x1, wt, wc, conv_bias, ct_bias, gamma, beta)
    assert out.shape == (1, 1, 6, 6), out.shape
    assert jnp.allclose(out, ref, atol=1e-5, rtol=1e-5), (out, ref)
    print("KERNEL_OK")
</pallas_src>

<mosaic_0001>
module attributes {stable_mosaic.version = 11 : i64} {
  func.func @_model_kernel(%arg0: memref<8x128xf32, #tpu.memory_space<vmem>>, %arg1: memref<9xf32, #tpu.memory_space<smem>>, %arg2: memref<9xf32, #tpu.memory_space<smem>>, %arg3: memref<5xf32, #tpu.memory_space<smem>>, %arg4: memref<8x128xf32, #tpu.memory_space<vmem>>) attributes {dimension_semantics = [], scalar_prefetch = 0 : i64, scratch_operands = 0 : i64, tpu.core_type = #tpu.core_type<tc>} {
    %c0 = arith.constant 0 : index
    %0 = memref.load %arg3[%c0] : memref<5xf32, #tpu.memory_space<smem>>
    %c1 = arith.constant 1 : index
    %1 = memref.load %arg3[%c1] : memref<5xf32, #tpu.memory_space<smem>>
    %c2 = arith.constant 2 : index
    %2 = memref.load %arg3[%c2] : memref<5xf32, #tpu.memory_space<smem>>
    %c3 = arith.constant 3 : index
    %3 = memref.load %arg3[%c3] : memref<5xf32, #tpu.memory_space<smem>>
    %c4 = arith.constant 4 : index
    %4 = memref.load %arg3[%c4] : memref<5xf32, #tpu.memory_space<smem>>
    %c0_0 = arith.constant 0 : index
    %c0_1 = arith.constant 0 : index
    %5 = vector.load %arg0[%c0_0, %c0_1] : memref<8x128xf32, #tpu.memory_space<vmem>>, vector<8x128xf32>
    %6 = tpu.iota {dimensions = array<i32: 0>} : vector<8x128xi32>
    %7 = tpu.iota {dimensions = array<i32: 1>} : vector<8x128xi32>
    %c5_i32 = arith.constant 5 : i32
    %8 = vector.broadcast %c5_i32 : i32 to vector<8x128xi32>
    %9 = arith.cmpi slt, %6, %8 : vector<8x128xi32>
    %c5_i32_2 = arith.constant 5 : i32
    %10 = vector.broadcast %c5_i32_2 : i32 to vector<8x128xi32>
    %11 = arith.cmpi slt, %7, %10 : vector<8x128xi32>
    %12 = arith.andi %9, %11 : vector<8x128xi1>
    %c6_i32 = arith.constant 6 : i32
    %13 = vector.broadcast %c6_i32 : i32 to vector<8x128xi32>
    %14 = arith.cmpi slt, %6, %13 : vector<8x128xi32>
    %c6_i32_3 = arith.constant 6 : i32
    %15 = vector.broadcast %c6_i32_3 : i32 to vector<8x128xi32>
    %16 = arith.cmpi slt, %7, %15 : vector<8x128xi32>
    %17 = arith.andi %14, %16 : vector<8x128xi1>
    %c1_i32 = arith.constant 1 : i32
    %18 = tpu.dynamic_rotate %5 by %c1_i32 dim 1 : vector<8x128xf32>, i32 -> vector<8x128xf32>
    %c127_i32 = arith.constant 127 : i32
    %19 = tpu.dynamic_rotate %5 by %c127_i32 dim 1 : vector<8x128xf32>, i32 -> vector<8x128xf32>
    %c8 = arith.constant 8 : index
    %20 = memref.load %arg1[%c8] : memref<9xf32, #tpu.memory_space<smem>>
    %21 = vector.broadcast %20 : f32 to vector<8x128xf32>
    %22 = arith.mulf %18, %21 : vector<8x128xf32>
    %c7 = arith.constant 7 : index
    %23 = memref.load %arg1[%c7] : memref<9xf32, #tpu.memory_space<smem>>
    %24 = vector.broadcast %23 : f32 to vector<8x128xf32>
    %25 = arith.mulf %5, %24 : vector<8x128xf32>
    %26 = arith.addf %22, %25 : vector<8x128xf32>
    %c6 = arith.constant 6 : index
    %27 = memref.load %arg1[%c6] : memref<9xf32, #tpu.memory_space<smem>>
    %28 = vector.broadcast %27 : f32 to vector<8x128xf32>
    %29 = arith.mulf %19, %28 : vector<8x128xf32>
    %30 = arith.addf %26, %29 : vector<8x128xf32>
    %c5 = arith.constant 5 : index
    %31 = memref.load %arg1[%c5] : memref<9xf32, #tpu.memory_space<smem>>
    %32 = vector.broadcast %31 : f32 to vector<8x128xf32>
    %33 = arith.mulf %18, %32 : vector<8x128xf32>
    %c4_4 = arith.constant 4 : index
    %34 = memref.load %arg1[%c4_4] : memref<9xf32, #tpu.memory_space<smem>>
    %35 = vector.broadcast %34 : f32 to vector<8x128xf32>
    %36 = arith.mulf %5, %35 : vector<8x128xf32>
    %37 = arith.addf %33, %36 : vector<8x128xf32>
    %c3_5 = arith.constant 3 : index
    %38 = memref.load %arg1[%c3_5] : memref<9xf32, #tpu.memory_space<smem>>
    %39 = vector.broadcast %38 : f32 to vector<8x128xf32>
    %40 = arith.mulf %19, %39 : vector<8x128xf32>
    %41 = arith.addf %37, %40 : vector<8x128xf32>
    %c2_6 = arith.constant 2 : index
    %42 = memref.load %arg1[%c2_6] : memref<9xf32, #tpu.memory_space<smem>>
    %43 = vector.broadcast %42 : f32 to vector<8x128xf32>
    %44 = arith.mulf %18, %43 : vector<8x128xf32>
    %c1_7 = arith.constant 1 : index
    %45 = memref.load %arg1[%c1_7] : memref<9xf32, #tpu.memory_space<smem>>
    %46 = vector.broadcast %45 : f32 to vector<8x128xf32>
    %47 = arith.mulf %5, %46 : vector<8x128xf32>
    %48 = arith.addf %44, %47 : vector<8x128xf32>
    %c0_8 = arith.constant 0 : index
    %49 = memref.load %arg1[%c0_8] : memref<9xf32, #tpu.memory_space<smem>>
    %50 = vector.broadcast %49 : f32 to vector<8x128xf32>
    %51 = arith.mulf %19, %50 : vector<8x128xf32>
    %52 = arith.addf %48, %51 : vector<8x128xf32>
    %c1_i32_9 = arith.constant 1 : i32
    %53 = tpu.dynamic_rotate %30 by %c1_i32_9 dim 0 : vector<8x128xf32>, i32 -> vector<8x128xf32>
    %54 = arith.addf %53, %41 : vector<8x128xf32>
    %c7_i32 = arith.constant 7 : i32
    %55 = tpu.dynamic_rotate %52 by %c7_i32 dim 0 : vector<8x128xf32>, i32 -> vector<8x128xf32>
    %56 = arith.addf %54, %55 : vector<8x128xf32>
    %57 = vector.broadcast %3 : f32 to vector<8x128xf32>
    %58 = arith.addf %56, %57 : vector<8x128xf32>
    %cst = arith.constant 0.000000e+00 : f32
    %59 = vector.broadcast %cst : f32 to vector<8x128xf32>
    %60 = arith.select %12, %58, %59 : vector<8x128xi1>, vector<8x128xf32>
    %cst_10 = arith.constant dense<0.000000e+00> : vector<8xf32>
    %61 = vector.multi_reduction <add>, %60, %cst_10 [1] : vector<8x128xf32> to vector<8xf32>
    %62 = vector.shape_cast %61 : vector<8xf32> to vector<8x1xf32>
    %cst_11 = arith.constant dense<0.000000e+00> : vector<1xf32>
    %63 = vector.multi_reduction <add>, %62, %cst_11 [0] : vector<8x1xf32> to vector<1xf32>
    %64 = vector.shape_cast %63 : vector<1xf32> to vector<1x1xf32>
    %65 = arith.mulf %60, %60 : vector<8x128xf32>
    %cst_12 = arith.constant dense<0.000000e+00> : vector<8xf32>
    %66 = vector.multi_reduction <add>, %65, %cst_12 [1] : vector<8x128xf32> to vector<8xf32>
    %67 = vector.shape_cast %66 : vector<8xf32> to vector<8x1xf32>
    %cst_13 = arith.constant dense<0.000000e+00> : vector<1xf32>
    %68 = vector.multi_reduction <add>, %67, %cst_13 [0] : vector<8x1xf32> to vector<1xf32>
    %69 = vector.shape_cast %68 : vector<1xf32> to vector<1x1xf32>
    %cst_14 = arith.constant 4.000000e-02 : f32
    %70 = vector.broadcast %cst_14 : f32 to vector<1x1xf32>
    %71 = arith.mulf %64, %70 : vector<1x1xf32>
    %cst_15 = arith.constant 4.000000e-02 : f32
    %72 = vector.broadcast %cst_15 : f32 to vector<1x1xf32>
    %73 = arith.mulf %69, %72 : vector<1x1xf32>
    %74 = arith.mulf %71, %71 : vector<1x1xf32>
    %75 = arith.subf %73, %74 : vector<1x1xf32>
    %cst_16 = arith.constant 0.000000e+00 : f32
    %76 = vector.broadcast %cst_16 : f32 to vector<1x1xf32>
    %77 = arith.maximumf %75, %76 : vector<1x1xf32>
    %78 = vector.broadcast %4 : f32 to vector<1x1xf32>
    %79 = arith.addf %77, %78 : vector<1x1xf32>
    %80 = math.rsqrt %79 : vector<1x1xf32>
    %81 = vector.broadcast %0 : f32 to vector<1x1xf32>
    %82 = arith.mulf %80, %81 : vector<1x1xf32>
    %83 = arith.mulf %71, %82 : vector<1x1xf32>
    %84 = vector.broadcast %1 : f32 to vector<1x1xf32>
    %85 = arith.subf %84, %83 : vector<1x1xf32>
    %86 = vector.broadcast %82 : vector<1x1xf32> to vector<8x128xf32>
    %87 = arith.mulf %60, %86 : vector<8x128xf32>
    %88 = vector.broadcast %85 : vector<1x1xf32> to vector<8x128xf32>
    %89 = arith.addf %87, %88 : vector<8x128xf32>
    %cst_17 = arith.constant 0.000000e+00 : f32
    %90 = vector.broadcast %cst_17 : f32 to vector<8x128xf32>
    %91 = arith.select %12, %89, %90 : vector<8x128xi1>, vector<8x128xf32>
    %c1_i32_18 = arith.constant 1 : i32
    %92 = tpu.dynamic_rotate %91 by %c1_i32_18 dim 1 : vector<8x128xf32>, i32 -> vector<8x128xf32>
    %c127_i32_19 = arith.constant 127 : i32
    %93 = tpu.dynamic_rotate %91 by %c127_i32_19 dim 1 : vector<8x128xf32>, i32 -> vector<8x128xf32>
    %c0_20 = arith.constant 0 : index
    %94 = memref.load %arg2[%c0_20] : memref<9xf32, #tpu.memory_space<smem>>
    %95 = vector.broadcast %94 : f32 to vector<8x128xf32>
    %96 = arith.mulf %92, %95 : vector<8x128xf32>
    %c1_21 = arith.constant 1 : index
    %97 = memref.load %arg2[%c1_21] : memref<9xf32, #tpu.memory_space<smem>>
    %98 = vector.broadcast %97 : f32 to vector<8x128xf32>
    %99 = arith.mulf %91, %98 : vector<8x128xf32>
    %100 = arith.addf %96, %99 : vector<8x128xf32>
    %c2_22 = arith.constant 2 : index
    %101 = memref.load %arg2[%c2_22] : memref<9xf32, #tpu.memory_space<smem>>
    %102 = vector.broadcast %101 : f32 to vector<8x128xf32>
    %103 = arith.mulf %93, %102 : vector<8x128xf32>
    %104 = arith.addf %100, %103 : vector<8x128xf32>
    %c3_23 = arith.constant 3 : index
    %105 = memref.load %arg2[%c3_23] : memref<9xf32, #tpu.memory_space<smem>>
    %106 = vector.broadcast %105 : f32 to vector<8x128xf32>
    %107 = arith.mulf %92, %106 : vector<8x128xf32>
    %c4_24 = arith.constant 4 : index
    %108 = memref.load %arg2[%c4_24] : memref<9xf32, #tpu.memory_space<smem>>
    %109 = vector.broadcast %108 : f32 to vector<8x128xf32>
    %110 = arith.mulf %91, %109 : vector<8x128xf32>
    %111 = arith.addf %107, %110 : vector<8x128xf32>
    %c5_25 = arith.constant 5 : index
    %112 = memref.load %arg2[%c5_25] : memref<9xf32, #tpu.memory_space<smem>>
    %113 = vector.broadcast %112 : f32 to vector<8x128xf32>
    %114 = arith.mulf %93, %113 : vector<8x128xf32>
    %115 = arith.addf %111, %114 : vector<8x128xf32>
    %c6_26 = arith.constant 6 : index
    %116 = memref.load %arg2[%c6_26] : memref<9xf32, #tpu.memory_space<smem>>
    %117 = vector.broadcast %116 : f32 to vector<8x128xf32>
    %118 = arith.mulf %92, %117 : vector<8x128xf32>
    %c7_27 = arith.constant 7 : index
    %119 = memref.load %arg2[%c7_27] : memref<9xf32, #tpu.memory_space<smem>>
    %120 = vector.broadcast %119 : f32 to vector<8x128xf32>
    %121 = arith.mulf %91, %120 : vector<8x128xf32>
    %122 = arith.addf %118, %121 : vector<8x128xf32>
    %c8_28 = arith.constant 8 : index
    %123 = memref.load %arg2[%c8_28] : memref<9xf32, #tpu.memory_space<smem>>
    %124 = vector.broadcast %123 : f32 to vector<8x128xf32>
    %125 = arith.mulf %93, %124 : vector<8x128xf32>
    %126 = arith.addf %122, %125 : vector<8x128xf32>
    %c1_i32_29 = arith.constant 1 : i32
    %127 = tpu.dynamic_rotate %104 by %c1_i32_29 dim 0 : vector<8x128xf32>, i32 -> vector<8x128xf32>
    %128 = arith.addf %127, %115 : vector<8x128xf32>
    %c7_i32_30 = arith.constant 7 : i32
    %129 = tpu.dynamic_rotate %126 by %c7_i32_30 dim 0 : vector<8x128xf32>, i32 -> vector<8x128xf32>
    %130 = arith.addf %128, %129 : vector<8x128xf32>
    %131 = vector.broadcast %2 : f32 to vector<8x128xf32>
    %132 = arith.addf %130, %131 : vector<8x128xf32>
    %cst_31 = arith.constant 0.000000e+00 : f32
    %133 = vector.broadcast %cst_31 : f32 to vector<8x128xf32>
    %134 = arith.select %12, %132, %133 : vector<8x128xi1>, vector<8x128xf32>
    %c1_i32_32 = arith.constant 1 : i32
    %135 = tpu.dynamic_rotate %134 by %c1_i32_32 dim 1 : vector<8x128xf32>, i32 -> vector<8x128xf32>
    %c127_i32_33 = arith.constant 127 : i32
    %136 = tpu.dynamic_rotate %134 by %c127_i32_33 dim 1 : vector<8x128xf32>, i32 -> vector<8x128xf32>
    %c8_34 = arith.constant 8 : index
    %137 = memref.load %arg1[%c8_34] : memref<9xf32, #tpu.memory_space<smem>>
    %138 = vector.broadcast %137 : f32 to vector<8x128xf32>
    %139 = arith.mulf %135, %138 : vector<8x128xf32>
    %c7_35 = arith.constant 7 : index
    %140 = memref.load %arg1[%c7_35] : memref<9xf32, #tpu.memory_space<smem>>
    %141 = vector.broadcast %140 : f32 to vector<8x128xf32>
    %142 = arith.mulf %134, %141 : vector<8x128xf32>
    %143 = arith.addf %139, %142 : vector<8x128xf32>
    %c6_36 = arith.constant 6 : index
    %144 = memref.load %arg1[%c6_36] : memref<9xf32, #tpu.memory_space<smem>>
    %145 = vector.broadcast %144 : f32 to vector<8x128xf32>
    %146 = arith.mulf %136, %145 : vector<8x128xf32>
    %147 = arith.addf %143, %146 : vector<8x128xf32>
    %c5_37 = arith.constant 5 : index
    %148 = memref.load %arg1[%c5_37] : memref<9xf32, #tpu.memory_space<smem>>
    %149 = vector.broadcast %148 : f32 to vector<8x128xf32>
    %150 = arith.mulf %135, %149 : vector<8x128xf32>
    %c4_38 = arith.constant 4 : index
    %151 = memref.load %arg1[%c4_38] : memref<9xf32, #tpu.memory_space<smem>>
    %152 = vector.broadcast %151 : f32 to vector<8x128xf32>
    %153 = arith.mulf %134, %152 : vector<8x128xf32>
    %154 = arith.addf %150, %153 : vector<8x128xf32>
    %c3_39 = arith.constant 3 : index
    %155 = memref.load %arg1[%c3_39] : memref<9xf32, #tpu.memory_space<smem>>
    %156 = vector.broadcast %155 : f32 to vector<8x128xf32>
    %157 = arith.mulf %136, %156 : vector<8x128xf32>
    %158 = arith.addf %154, %157 : vector<8x128xf32>
    %c2_40 = arith.constant 2 : index
    %159 = memref.load %arg1[%c2_40] : memref<9xf32, #tpu.memory_space<smem>>
    %160 = vector.broadcast %159 : f32 to vector<8x128xf32>
    %161 = arith.mulf %135, %160 : vector<8x128xf32>
    %c1_41 = arith.constant 1 : index
    %162 = memref.load %arg1[%c1_41] : memref<9xf32, #tpu.memory_space<smem>>
    %163 = vector.broadcast %162 : f32 to vector<8x128xf32>
    %164 = arith.mulf %134, %163 : vector<8x128xf32>
    %165 = arith.addf %161, %164 : vector<8x128xf32>
    %c0_42 = arith.constant 0 : index
    %166 = memref.load %arg1[%c0_42] : memref<9xf32, #tpu.memory_space<smem>>
    %167 = vector.broadcast %166 : f32 to vector<8x128xf32>
    %168 = arith.mulf %136, %167 : vector<8x128xf32>
    %169 = arith.addf %165, %168 : vector<8x128xf32>
    %c1_i32_43 = arith.constant 1 : i32
    %170 = tpu.dynamic_rotate %147 by %c1_i32_43 dim 0 : vector<8x128xf32>, i32 -> vector<8x128xf32>
    %171 = arith.addf %170, %158 : vector<8x128xf32>
    %c7_i32_44 = arith.constant 7 : i32
    %172 = tpu.dynamic_rotate %169 by %c7_i32_44 dim 0 : vector<8x128xf32>, i32 -> vector<8x128xf32>
    %173 = arith.addf %171, %172 : vector<8x128xf32>
    %174 = vector.broadcast %3 : f32 to vector<8x128xf32>
    %175 = arith.addf %173, %174 : vector<8x128xf32>
    %cst_45 = arith.constant 0.000000e+00 : f32
    %176 = vector.broadcast %cst_45 : f32 to vector<8x128xf32>
    %177 = arith.select %17, %175, %176 : vector<8x128xi1>, vector<8x128xf32>
    %c0_46 = arith.constant 0 : index
    %c0_47 = arith.constant 0 : index
    %178 = vector.load %arg4[%c0_46, %c0_47] : memref<8x128xf32, #tpu.memory_space<vmem>>, vector<8x128xf32>
    tpu.vector_store %arg4[%c0_46, %c0_47], %177 {strides = array<i32>} : memref<8x128xf32, #tpu.memory_space<vmem>>, vector<8x128xf32>,
    return
  }
}

</mosaic_0001>

<llo_original>
// kernel: model_forward.1
$region0: #{model_forward.1}
  #allocation0 [shape = 'u32[]', space=smem, size = 0x4, offset = 0x4, fixed_abs, tag = 'smem constant byte address 0x4 - core index']
  #allocation1 [shape = 'u32[72,128]{1,0:T(1,128)}', space=vmem, size = 0x9000, scoped, tag = 'internal scratch']
  %s0 = inlined_call_operand.vmem [shape: f32[8,128], index: 0, kind: input, shape index: {}]
  %s1 = inlined_call_operand.vmem [shape: f32[9], index: 1, kind: input, shape index: {}]
  %s2 = inlined_call_operand.vmem [shape: f32[9], index: 2, kind: input, shape index: {}]
  %s3 = inlined_call_operand.vmem [shape: f32[5], index: 3, kind: input, shape index: {}]
  %s4 = inlined_call_operand.vmem [shape: f32[8,128], index: 4, kind: output, shape index: {}]
  %s5 = sld [smem:[#allocation0]]
  $region38: #{model_forward.1} parent=0
    _
  %s7 = ssub.s32 1, %s5
  %s8 = scalar_select 0, %s7, %s5
  $region1: #{model_forward.1} parent=0
    #allocation2 [shape = 'u8[512]{0}', space=smem, size = 0x200, scoped, tag = 'input window, operand 1, single buffered']
    #allocation3 [shape = 's32[1]{0}', space=sflag, size = 0x4, scoped, tag = 'scoped memory for model_forward.1']
    #allocation4 [shape = 'u8[512]{0}', space=smem, size = 0x200, scoped, tag = 'input window, operand 2, single buffered']
    #allocation5 [shape = 's32[1]{0}', space=sflag, size = 0x4, scoped, tag = 'scoped memory for model_forward.1']
    #allocation6 [shape = 'u8[512]{0}', space=smem, size = 0x200, scoped, tag = 'input window, operand 3, single buffered']
    %9 = vsyncpa [#allocation3], 0
    %10 = vsyncpa [#allocation5], 0
    // Predicated region
    $region2: #{model_forward.1} parent=1 // pred_check
      _
    $region3: #{model_forward.1} parent=1 // pred_check_branch
      %12 = sbr.rel (0) target = $region5
    $region4: #{model_forward.1} parent=1 // pred_region
      _
    $region5: #{model_forward.1} parent=1 // pred_fallthru
      _
    // Predicated region
    $region6: #{model_forward.1} parent=1 // pred_check
      _
    $region7: #{model_forward.1} parent=1 // pred_check_branch
      %14 = sbr.rel (0) target = $region9
    $region8: #{model_forward.1} parent=1 // pred_region
      %16 = vsyncadd [#allocation3], 0
      %s18 = sshll.u32 %s1, 4
      %s19 = int_to_ptr.vmem [resolvable:$true] %s18
      %21 = dma.vmem_to_smem %s19, 16, [#allocation2], [#allocation3]
    $region9: #{model_forward.1} parent=1 // pred_fallthru
      _
    // Predicated region
    $region10: #{model_forward.1} parent=1 // pred_check
      _
    $region11: #{model_forward.1} parent=1 // pred_check_branch
      %23 = sbr.rel (0) target = $region13
    $region12: #{model_forward.1} parent=1 // pred_region
      %25 = vsyncadd [#allocation5], 0
      %s27 = sshll.u32 %s2, 4
      %s28 = int_to_ptr.vmem [resolvable:$true] %s27
      %30 = dma.vmem_to_smem %s28, 16, [#allocation4], [#allocation5]
    $region13: #{model_forward.1} parent=1 // pred_fallthru
      _
    // Predicated region
    $region14: #{model_forward.1} parent=1 // pred_check
      _
    $region15: #{model_forward.1} parent=1 // pred_check_branch
      %32 = sbr.rel (0) target = $region17
    $region16: #{model_forward.1} parent=1 // pred_region
      %34 = vsyncadd [#allocation5], 0
      %s36 = sshll.u32 %s3, 4
      %s37 = int_to_ptr.vmem [resolvable:$true] %s36
      %39 = dma.vmem_to_smem %s37, 16, [#allocation6], [#allocation5]
    $region17: #{model_forward.1} parent=1 // pred_fallthru
      _
    // Predicated region
    $region18: #{model_forward.1} parent=1 // pred_check
      _
    $region19: #{model_forward.1} parent=1 // pred_check_branch
      %41 = sbr.rel (0) target = $region21
    $region20: #{model_forward.1} parent=1 // pred_region
      %43 = dma.done [#allocation3], 16
    $region21: #{model_forward.1} parent=1 // pred_fallthru
      _
    // Predicated region
    $region22: #{model_forward.1} parent=1 // pred_check
      _
    $region23: #{model_forward.1} parent=1 // pred_check_branch
      %45 = sbr.rel (0) target = $region25
    $region24: #{model_forward.1} parent=1 // pred_region
      %47 = dma.done [#allocation5], 16
    $region25: #{model_forward.1} parent=1 // pred_fallthru
      _
    // Predicated region
    $region26: #{model_forward.1} parent=1 // pred_check
      _
    $region27: #{model_forward.1} parent=1 // pred_check_branch
      %49 = sbr.rel (0) target = $region29
    $region28: #{model_forward.1} parent=1 // pred_region
      %51 = dma.done [#allocation5], 16
    $region29: #{model_forward.1} parent=1 // pred_fallthru
      _
    %52 = sfence
    %s53 = sld [smem:[#allocation6]]
    %s54 = sld [smem:[#allocation6 + $0x1]]
    %s55 = sld [smem:[#allocation6 + $0x2]]
    %s56 = sld [smem:[#allocation6 + $0x3]]
    %s57 = sld [smem:[#allocation6 + $0x4]]
    %v58 = vld [vmem:[%s0] sm:$0xff]
    %v59 = vlaneseq
    %v60 = vshrl.u32 %v59, 7
    %v61 = vlaneseq
    %v62 = vand.u32 %v61, 127
    %vm63 = vcmp.lt.s32.totalorder %v60, 5
    %vm64 = vcmp.lt.s32.totalorder %v62, 5
    %vm65 = vmand %vm63, %vm64
    %vm66 = vcmp.lt.s32.totalorder %v60, 6
    %vm67 = vcmp.lt.s32.totalorder %v62, 6
    %vm68 = vmand %vm66, %vm67
    %69 = vrot.lane.b32.xlu0 %v58, 1
    %v70 = vpop.permute.xlu0 %69
    %71 = vrot.lane.b32.xlu0 %v58, 127
    %v72 = vpop.permute.xlu0 %71
    %s73 = sld [smem:[#allocation2 + $0x8]]
    %v74 = vstv %s73
    %v75 = vmul.f32 %v70, %v74
    %s76 = sld [smem:[#allocation2 + $0x7]]
    %v77 = vstv %s76
    %v78 = vmul.f32 %v58, %v77
    %v79 = vadd.f32 %v75, %v78
    %s80 = sld [smem:[#allocation2 + $0x6]]
    %v81 = vstv %s80
    %v82 = vmul.f32 %v72, %v81
    %v83 = vadd.f32 %v79, %v82
    %s84 = sld [smem:[#allocation2 + $0x5]]
    %v85 = vstv %s84
    %v86 = vmul.f32 %v70, %v85
    %s87 = sld [smem:[#allocation2 + $0x4]]
    %v88 = vstv %s87
    %v89 = vmul.f32 %v58, %v88
    %v90 = vadd.f32 %v86, %v89
    %s91 = sld [smem:[#allocation2 + $0x3]]
    %v92 = vstv %s91
    %v93 = vmul.f32 %v72, %v92
    %v94 = vadd.f32 %v90, %v93
    %s95 = sld [smem:[#allocation2 + $0x2]]
    %v96 = vstv %s95
    %v97 = vmul.f32 %v70, %v96
    %s98 = sld [smem:[#allocation2 + $0x1]]
    %v99 = vstv %s98
    %v100 = vmul.f32 %v58, %v99
    %v101 = vadd.f32 %v97, %v100
    %s102 = sld [smem:[#allocation2]]
    %v103 = vstv %s102
    %v104 = vmul.f32 %v72, %v103
    %v105 = vadd.f32 %v101, %v104
    %v106 = vrot.slane %v83, 7
    %v107 = vadd.f32 %v106, %v94
    %v108 = vrot.slane %v105, 1
    %v109 = vadd.f32 %v107, %v108
    %v110 = vstv %s56
    %v111 = vadd.f32 %v109, %v110
    %v112 = vsel %vm65, %v111, 0.0
    %113 = vadd.xlane.f32.xlu0 %v112
    %v114 = vpop.xlane.xlu0 %113
    %v115 = vrot.slane %v114, 4
    %v116 = vadd.f32 %v114, %v115
    %v117 = vrot.slane %v116, 2
    %v118 = vadd.f32 %v116, %v117
    %v119 = vrot.slane %v118, 1
    %v120 = vadd.f32 %v118, %v119
    %v121 = vmul.f32 %v112, %v112
    %122 = vadd.xlane.f32.xlu0 %v121
    %v123 = vpop.xlane.xlu0 %122
    %v124 = vrot.slane %v123, 4
    %v125 = vadd.f32 %v123, %v124
    %v126 = vrot.slane %v125, 2
    %v127 = vadd.f32 %v125, %v126
    %v128 = vrot.slane %v127, 1
    %v129 = vadd.f32 %v127, %v128
    %v130 = vmul.f32 %v120, 0.04
    %v131 = vmul.f32 %v129, 0.04
    %v132 = vmul.f32 %v130, %v130
    %v133 = vsub.f32 %v131, %v132
    %v134 = vmax.f32 %v133, 0.0
    %v135 = vstv %s57
    %v136 = vadd.f32 %v134, %v135
    %v137 = vrsqrt.pop %v136
    %v138 = vmul.f32 %v137, %v136
    %v139 = vmul.f32 %v138, %v137
    %v140 = vmul.f32 0.5, %v139
    %v141 = vsub.f32 1.5, %v140
    %v142 = vmul.f32 %v137, %v141
    %vm143 = vweird.f32 %v136
    %vm144 = vweird.f32 %v137
    %vm145 = vmor %vm143, %vm144
    %v146 = vsel %vm145, %v137, %v142
    %v147 = vstv %s53
    %v148 = vmul.f32 %v146, %v147
    %v149 = vmul.f32 %v130, %v148
    %v150 = vstv %s54
    %v151 = vsub.f32 %v150, %v149
    %v152 = vmul.f32 %v112, %v148
    %v153 = vadd.f32 %v152, %v151
    %v154 = vsel %vm65, %v153, 0.0
    %155 = vrot.lane.b32.xlu0 %v154, 1
    %v156 = vpop.permute.xlu0 %155
    %157 = vrot.lane.b32.xlu0 %v154, 127
    %v158 = vpop.permute.xlu0 %157
    %s159 = sld [smem:[#allocation4]]
    %v160 = vstv %s159
    %v161 = vmul.f32 %v156, %v160
    %s162 = sld [smem:[#allocation4 + $0x1]]
    %v163 = vstv %s162
    %v164 = vmul.f32 %v154, %v163
    %v165 = vadd.f32 %v161, %v164
    %s166 = sld [smem:[#allocation4 + $0x2]]
    %v167 = vstv %s166
    %v168 = vmul.f32 %v158, %v167
    %v169 = vadd.f32 %v165, %v168
    %s170 = sld [smem:[#allocation4 + $0x3]]
    %v171 = vstv %s170
    %v172 = vmul.f32 %v156, %v171
    %s173 = sld [smem:[#allocation4 + $0x4]]
    %v174 = vstv %s173
    %v175 = vmul.f32 %v154, %v174
    %v176 = vadd.f32 %v172, %v175
    %s177 = sld [smem:[#allocation4 + $0x5]]
    %v178 = vstv %s177
    %v179 = vmul.f32 %v158, %v178
    %v180 = vadd.f32 %v176, %v179
    %s181 = sld [smem:[#allocation4 + $0x6]]
    %v182 = vstv %s181
    %v183 = vmul.f32 %v156, %v182
    %s184 = sld [smem:[#allocation4 + $0x7]]
    %v185 = vstv %s184
    %v186 = vmul.f32 %v154, %v185
    %v187 = vadd.f32 %v183, %v186
    %s188 = sld [smem:[#allocation4 + $0x8]]
    %v189 = vstv %s188
    %v190 = vmul.f32 %v158, %v189
    %v191 = vadd.f32 %v187, %v190
    %v192 = vrot.slane %v169, 7
    %v193 = vadd.f32 %v192, %v180
    %v194 = vrot.slane %v191, 1
    %v195 = vadd.f32 %v193, %v194
    %v196 = vstv %s55
    %v197 = vadd.f32 %v195, %v196
    %v198 = vsel %vm65, %v197, 0.0
    %199 = vrot.lane.b32.xlu0 %v198, 1
    %v200 = vpop.permute.xlu0 %199
    %201 = vrot.lane.b32.xlu0 %v198, 127
    %v202 = vpop.permute.xlu0 %201
    %v203 = vmul.f32 %v200, %v74
    %v204 = vmul.f32 %v198, %v77
    %v205 = vadd.f32 %v203, %v204
    %v206 = vmul.f32 %v202, %v81
    %v207 = vadd.f32 %v205, %v206
    %v208 = vmul.f32 %v200, %v85
    %v209 = vmul.f32 %v198, %v88
    %v210 = vadd.f32 %v208, %v209
    %v211 = vmul.f32 %v202, %v92
    %v212 = vadd.f32 %v210, %v211
    %v213 = vmul.f32 %v200, %v96
    %v214 = vmul.f32 %v198, %v99
    %v215 = vadd.f32 %v213, %v214
    %v216 = vmul.f32 %v202, %v103
    %v217 = vadd.f32 %v215, %v216
    %v218 = vrot.slane %v207, 7
    %v219 = vadd.f32 %v218, %v212
    %v220 = vrot.slane %v217, 1
    %v221 = vadd.f32 %v219, %v220
    %v222 = vadd.f32 %v221, %v110
    %v223 = vsel %vm68, %v222, 0.0
    %224 = vst [vmem:[%s4] sm:$0xff] %v223
    // Predicated region
    $region30: #{model_forward.1} parent=1 // pred_check
      _
    $region31: #{model_forward.1} parent=1 // pred_check_branch
      %226 = sbr.rel (0) target = $region33
    $region32: #{model_forward.1} parent=1 // pred_region
      _
    $region33: #{model_forward.1} parent=1 // pred_fallthru
      _
    // Predicated region
    $region34: #{model_forward.1} parent=1 // pred_check
      _
    $region35: #{model_forward.1} parent=1 // pred_check_branch
      %228 = sbr.rel (0) target = $region37
    $region36: #{model_forward.1} parent=1 // pred_region
      _
    $region37: #{model_forward.1} parent=1 // pred_fallthru
      _
    %229 = vsyncpa [#allocation3], 1
    %230 = vsyncpa [#allocation5], 1

</llo_original>
